<compile_context>
chip_gen: v7x
topology: tpu7x:2x2x1
jax: 0.10.0
libtpu: 0.0.40
codegen_flags: <defaults>
</compile_context>

<pallas_src>
import math

import jax
import jax.numpy as jnp
from jax.experimental import pallas as pl
from jax.experimental.pallas import tpu as pltpu


_LANE = 128
_TARGET_TILE_BYTES = 4 * 1024 * 1024      # ~4 MiB per input tile
_VMEM_LIMIT_BYTES = 32 * 1024 * 1024      # 3 arrays x 2 buffers x 4 MiB = 24 MiB


def _cdiv(a, b):
    return -(-a // b)


def _round_up(a, b):
    return _cdiv(a, b) * b


def _sublane_for(dtype) -> int:
    """Minimum sublane multiple for a dtype: 8 (4B), 16 (2B), 32 (1B)."""
    itemsize = jnp.dtype(dtype).itemsize
    return max(8, 32 // itemsize)


def _num_tensorcores() -> int:
    """Best-effort TensorCore count of the default device (v7x has 2/chip)."""
    try:
        dev = jax.devices()[0]
        if dev.platform != "tpu":
            return 1
        kind = (getattr(dev, "device_kind", "") or "").lower()
        return 2 if "7" in kind else 1   # v5e / v6e -> 1 TC, v7x -> 2 TCs
    except Exception:
        return 1


# ----------------------------- Pallas kernels --------------------------------
def _annealing_mask_train_kernel(inv_temp_ref, x_ref, logits_ref, o_ref):
    """Training path: soft sigmoid mask at the annealed temperature."""
    inv_temp = inv_temp_ref[0, 0]                              # f32 in SMEM
    logits = logits_ref[...].astype(jnp.float32)
    mask = jax.nn.sigmoid(logits * inv_temp)                   # EUP exp
    o_ref[...] = (x_ref[...].astype(jnp.float32) * mask).astype(o_ref.dtype)


def _annealing_mask_eval_kernel(x_ref, logits_ref, o_ref):
    """Eval path: hard mask. sigmoid(l) >= 0.5  <=>  l >= 0 (single vselect)."""
    zero = jnp.zeros((), dtype=o_ref.dtype)
    o_ref[...] = jnp.where(logits_ref[...] >= 0, x_ref[...], zero)


# ------------------------------ host helpers ---------------------------------
def get_temperature(current_step, total_iters=30000, start_temp=5.0,
                    end_temp=0.1, annealing_start_iter=10000):
    """AnnealingMask.get_temperature (traceable: works with int or traced step)."""
    step = jnp.asarray(current_step, jnp.float32)
    progress = (step - annealing_start_iter) / float(total_iters - annealing_start_iter)
    progress = jnp.clip(progress, 0.0, 1.0)
    temp = start_temp * jnp.exp(math.log(end_temp / start_temp) * progress)
    return jnp.where(step < annealing_start_iter, jnp.float32(start_temp), temp)


def _choose_tile_rows(rows, sublane, itemsize, num_cores):
    """Row-tile: as large as possible (long DMAs); on 2-TC chips aim for ~4
    grid steps so the parallel axis balances across cores."""
    target_rows = max(sublane, _TARGET_TILE_BYTES // (_LANE * itemsize))
    tile = min(target_rows, rows)
    if num_cores > 1 and rows > 2 * sublane:
        quarter = _round_up(_cdiv(rows, 4), sublane)
        tile = min(tile, max(sublane, quarter))
    return max(sublane, (tile // sublane) * sublane)


# ------------------------------ host wrapper ---------------------------------
def annealing_mask_forward(x, mask_logits, current_step, *, training=True,
                           total_iters=30000, start_temp=5.0, end_temp=0.1,
                           annealing_start_iter=10000):
    """Forward pass of AnnealingMask via a Pallas TPU kernel.

    x, mask_logits: arrays of identical (arbitrary) shape and dtype.
    """
    assert x.shape == mask_logits.shape
    orig_shape = x.shape
    total = int(math.prod(orig_shape)) if orig_shape else 1
    dtype = x.dtype
    itemsize = jnp.dtype(dtype).itemsize
    sublane = _sublane_for(dtype)

    if training:
        temperature = get_temperature(
            current_step, total_iters=total_iters, start_temp=start_temp,
            end_temp=end_temp, annealing_start_iter=annealing_start_iter)

    # --- tiny-input fallback: below one minimal HW tile, dispatch dominates --
    if total < sublane * _LANE:
        if training:
            mask = jax.nn.sigmoid(mask_logits.astype(jnp.float32) / temperature)
            return (x.astype(jnp.float32) * mask).astype(dtype)
        return jnp.where(mask_logits >= 0, x, jnp.zeros((), dtype))

    # --- lane-dense [rows, 128] view; contiguous reshape = metadata only -----
    if total % _LANE == 0:
        rows = total // _LANE
        pad = 0
        x2 = x.reshape(rows, _LANE)
        l2 = mask_logits.reshape(rows, _LANE)
    else:
        # Rare ragged case: pad to the next lane multiple (< 128 extra elems).
        rows = _cdiv(total, _LANE)
        pad = rows * _LANE - total
        x2 = jnp.pad(jnp.ravel(x), (0, pad)).reshape(rows, _LANE)
        l2 = jnp.pad(jnp.ravel(mask_logits), (0, pad)).reshape(rows, _LANE)

    num_cores = _num_tensorcores()
    tile_rows = _choose_tile_rows(rows, sublane, itemsize, num_cores)
    grid = (pl.cdiv(rows, tile_rows),)       # boundary block masked by Pallas

    tile_spec = pl.BlockSpec((tile_rows, _LANE), lambda i: (i, 0))
    out_shape = jax.ShapeDtypeStruct((rows, _LANE), dtype)
    compiler_params = pltpu.CompilerParams(
        dimension_semantics=("parallel",),
        vmem_limit_bytes=_VMEM_LIMIT_BYTES,
    )
    nbytes = 3 * rows * _LANE * itemsize      # strictly HBM-bandwidth-bound

    if training:
        cost = pl.CostEstimate(flops=2 * rows * _LANE,
                               transcendentals=rows * _LANE,
                               bytes_accessed=nbytes)
        inv_temp = jnp.reshape((1.0 / temperature).astype(jnp.float32), (1, 1))
        scalar_spec = pl.BlockSpec((1, 1), lambda i: (0, 0),
                                   memory_space=pltpu.SMEM)
        out2 = pl.pallas_call(
            _annealing_mask_train_kernel,
            out_shape=out_shape,
            grid=grid,
            in_specs=[scalar_spec, tile_spec, tile_spec],
            out_specs=tile_spec,
            compiler_params=compiler_params,
            cost_estimate=cost,
        )(inv_temp, x2, l2)
    else:
        cost = pl.CostEstimate(flops=rows * _LANE, transcendentals=0,
                               bytes_accessed=nbytes)
        out2 = pl.pallas_call(
            _annealing_mask_eval_kernel,
            out_shape=out_shape,
            grid=grid,
            in_specs=[tile_spec, tile_spec],
            out_specs=tile_spec,
            compiler_params=compiler_params,
            cost_estimate=cost,
        )(x2, l2)

    if pad:
        return out2.reshape(-1)[:total].reshape(orig_shape)
    return out2.reshape(orig_shape)


# ------------------------------- reference -----------------------------------
def annealing_mask_reference(x, mask_logits, current_step, *, training=True):
    if training:
        temperature = get_temperature(current_step)
        mask = jax.nn.sigmoid(mask_logits.astype(jnp.float32) / temperature)
        return (x.astype(jnp.float32) * mask).astype(x.dtype)
    mask = (jax.nn.sigmoid(mask_logits) >= 0.5).astype(x.dtype)
    return x * mask


# --------------------------------- main ---------------------------------------
if __name__ == "__main__":
    key = jax.random.PRNGKey(0)
    kx, kl, kx2, kl2 = jax.random.split(key, 4)

    # Small NCHW-style shape consistent with the module's `input_shape`.
    shape = (2, 4, 16, 16)
    x = jax.random.normal(kx, shape, dtype=jnp.float32)
    # Module init is zeros(input_shape)+1; perturb so the eval branch sees
    # both signs of the logits.
    mask_logits = 0.5 * jax.random.normal(kl, shape, dtype=jnp.float32)

    step = 15000  # inside the annealing window

    # training path (soft sigmoid mask at annealed temperature)
    out_train = jax.block_until_ready(
        annealing_mask_forward(x, mask_logits, step, training=True))
    ref_train = annealing_mask_reference(x, mask_logits, step, training=True)
    assert out_train.shape == shape
    assert jnp.allclose(out_train, ref_train, atol=1e-6, rtol=1e-5)

    # eval path (hard binary mask)
    out_eval = jax.block_until_ready(
        annealing_mask_forward(x, mask_logits, step, training=False))
    ref_eval = annealing_mask_reference(x, mask_logits, step, training=False)
    assert out_eval.shape == shape
    assert jnp.allclose(out_eval, ref_eval, atol=1e-6, rtol=1e-5)

    # Ragged shape exercising the (rare) pad path + masked boundary block.
    shape2 = (37, 50)  # 1850 elements, not a multiple of 128
    xr = jax.random.normal(kx2, shape2, dtype=jnp.float32)
    lr = 0.5 * jax.random.normal(kl2, shape2, dtype=jnp.float32)
    out_r = jax.block_until_ready(
        annealing_mask_forward(xr, lr, step, training=True))
    ref_r = annealing_mask_reference(xr, lr, step, training=True)
    assert jnp.allclose(out_r, ref_r, atol=1e-6, rtol=1e-5)

    # bf16 path (16-sublane tiles, in-kernel f32 math + cast on store).
    xb = x.astype(jnp.bfloat16)
    lb = mask_logits.astype(jnp.bfloat16)
    out_b = jax.block_until_ready(
        annealing_mask_forward(xb, lb, step, training=True))
    ref_b = annealing_mask_reference(xb, lb, step, training=True)
    assert out_b.dtype == jnp.bfloat16
    assert jnp.allclose(out_b.astype(jnp.float32), ref_b.astype(jnp.float32),
                        atol=2e-2, rtol=2e-2)

    print("KERNEL_OK")
</pallas_src>

<mosaic_0001>
module attributes {stable_mosaic.version = 11 : i64} {
  func.func @_annealing_mask_train_kernel(%arg0: i32, %arg1: memref<1x1xf32, #tpu.memory_space<smem>>, %arg2: memref<16x128xf32, #tpu.memory_space<vmem>>, %arg3: memref<16x128xf32, #tpu.memory_space<vmem>>, %arg4: memref<16x128xf32, #tpu.memory_space<vmem>>) attributes {dimension_semantics = [#tpu.dimension_semantics<parallel>], iteration_bounds = array<i64: 1>, scalar_prefetch = 0 : i64, scratch_operands = 0 : i64, tpu.core_type = #tpu.core_type<tc>, window_params = [{transform_indices = @transform_0, window_bounds = array<i64: 1, 1>}, {transform_indices = @transform_1, window_bounds = array<i64: 16, 128>}, {transform_indices = @transform_2, window_bounds = array<i64: 16, 128>}, {transform_indices = @transform_3, window_bounds = array<i64: 16, 128>}]} {
    %c0 = arith.constant 0 : index
    %c0_0 = arith.constant 0 : index
    %0 = memref.load %arg1[%c0, %c0_0] : memref<1x1xf32, #tpu.memory_space<smem>>
    %c0_1 = arith.constant 0 : index
    %c0_2 = arith.constant 0 : index
    %1 = vector.load %arg3[%c0_1, %c0_2] : memref<16x128xf32, #tpu.memory_space<vmem>>, vector<16x128xf32>
    %2 = vector.broadcast %0 : f32 to vector<16x128xf32>
    %3 = arith.mulf %1, %2 : vector<16x128xf32>
    %4 = arith.negf %3 : vector<16x128xf32>
    %5 = math.exp %4 : vector<16x128xf32>
    %cst = arith.constant 1.000000e+00 : f32
    %6 = vector.broadcast %cst : f32 to vector<16x128xf32>
    %7 = arith.addf %6, %5 : vector<16x128xf32>
    %8 = arith.divf %6, %7 : vector<16x128xf32>
    %c0_3 = arith.constant 0 : index
    %c0_4 = arith.constant 0 : index
    %9 = vector.load %arg2[%c0_3, %c0_4] : memref<16x128xf32, #tpu.memory_space<vmem>>, vector<16x128xf32>
    %10 = arith.mulf %9, %8 : vector<16x128xf32>
    %c0_5 = arith.constant 0 : index
    %c0_6 = arith.constant 0 : index
    %11 = vector.load %arg4[%c0_5, %c0_6] : memref<16x128xf32, #tpu.memory_space<vmem>>, vector<16x128xf32>
    tpu.vector_store %arg4[%c0_5, %c0_6], %10 {strides = array<i32>} : memref<16x128xf32, #tpu.memory_space<vmem>>, vector<16x128xf32>,
    return
  }
  func.func @transform_0(%arg0: i32) -> (i32, i32) {
    %c0_i32 = arith.constant 0 : i32
    %c0_i32_0 = arith.constant 0 : i32
    %c0_i32_1 = arith.constant 0 : i32
    return %c0_i32, %c0_i32_0 : i32, i32
  }
  func.func @transform_1(%arg0: i32) -> (i32, i32) {
    %c0_i32 = arith.constant 0 : i32
    %c0_i32_0 = arith.constant 0 : i32
    return %arg0, %c0_i32 : i32, i32
  }
  func.func @transform_2(%arg0: i32) -> (i32, i32) {
    %c0_i32 = arith.constant 0 : i32
    %c0_i32_0 = arith.constant 0 : i32
    return %arg0, %c0_i32 : i32, i32
  }
  func.func @transform_3(%arg0: i32) -> (i32, i32) {
    %c0_i32 = arith.constant 0 : i32
    %c0_i32_0 = arith.constant 0 : i32
    return %arg0, %c0_i32 : i32, i32
  }
}

</mosaic_0001>

<llo_original>
// kernel: tpu_custom_call.1
$region0: #{tpu_custom_call.1}
  #allocation0 [shape = 'u32[]', space=smem, size = 0x4, offset = 0x4, fixed_abs, tag = 'smem constant byte address 0x4 - core index']
  #allocation1 [shape = 'u32[144,128]{1,0:T(1,128)}', space=vmem, size = 0x12000, scoped, tag = 'internal scratch']
  #allocation2 [shape = 'f32[1,1]{1,0:T(1,128)S(6)}', space=smem, size = 0x200, scoped, tag = 'scoped memory for tpu_custom_call.1']
  %s0 = inlined_call_operand.<no memory space> [shape: f32[1,1], index: 0, kind: input, shape index: {}]
  %s1 = inlined_call_operand.hbm [shape: f32[16,128], index: 1, kind: input, shape index: {}]
  %s2 = inlined_call_operand.hbm [shape: f32[16,128], index: 2, kind: input, shape index: {}]
  %s3 = inlined_call_operand.hbm [shape: f32[16,128], index: 3, kind: output, shape index: {}]
  %s4 = sld [smem:[#allocation0]]
  $region30: #{tpu_custom_call.1} parent=0
    _
  %s6 = ssub.s32 1, %s4
  %s7 = scalar_select 0, %s6, %s4
  %8 = sst [smem:[#allocation2]] %s0
  $region1: #{tpu_custom_call.1} parent=0
    #allocation3 [shape = 'u8[8192]{0}', space=vmem, size = 0x2000, scoped, tag = 'input window, operand 1, single buffered']
    #allocation4 [shape = 's32[1]{0}', space=sflag, size = 0x4, scoped, tag = 'scoped memory for tpu_custom_call.1']
    #allocation5 [shape = 's32[1]{0}', space=sflag, size = 0x4, scoped, tag = 'scoped memory for tpu_custom_call.1']
    #allocation6 [shape = 'u8[8192]{0}', space=vmem, size = 0x2000, scoped, tag = 'input window, operand 2, single buffered']
    #allocation7 [shape = 's32[1]{0}', space=sflag, size = 0x4, scoped, tag = 'scoped memory for tpu_custom_call.1']
    #allocation8 [shape = 'u8[8192]{0}', space=vmem, size = 0x2000, scoped, tag = 'output window, operand 0, single buffered']
    %9 = vsyncpa [#allocation4], 0
    %10 = vsyncpa [#allocation7], 0
    %11 = vsyncpa [#allocation5], 0
    // Predicated region
    $region2: #{tpu_custom_call.1} parent=1 // pred_check
      _
    $region3: #{tpu_custom_call.1} parent=1 // pred_check_branch
      %13 = sbr.rel (0) target = $region5
    $region4: #{tpu_custom_call.1} parent=1 // pred_region
      _
    $region5: #{tpu_custom_call.1} parent=1 // pred_fallthru
      _
    // Predicated region
    $region6: #{tpu_custom_call.1} parent=1 // pred_check
      _
    $region7: #{tpu_custom_call.1} parent=1 // pred_check_branch
      %15 = sbr.rel (0) target = $region9
    $region8: #{tpu_custom_call.1} parent=1 // pred_region
      %s17 = ssub.s32 256, 256
      %18 = vsyncadd [#allocation4], %s17
      %s19 = sshll.u32 [#allocation3], 4
      %s20 = int_to_ptr.vmem [resolvable:$true] %s19
      %25 = dma.hbm_to_vmem [thread:$0]  %s1, 256, %s20, [#allocation4], 128, 128, 8
    $region9: #{tpu_custom_call.1} parent=1 // pred_fallthru
      _
    // Predicated region
    $region10: #{tpu_custom_call.1} parent=1 // pred_check
      _
    $region11: #{tpu_custom_call.1} parent=1 // pred_check_branch
      %27 = sbr.rel (0) target = $region13
    $region12: #{tpu_custom_call.1} parent=1 // pred_region
      %s29 = ssub.s32 256, 256
      %30 = vsyncadd [#allocation7], %s29
      %s31 = sshll.u32 [#allocation6], 4
      %s32 = int_to_ptr.vmem [resolvable:$true] %s31
      %37 = dma.hbm_to_vmem [thread:$0]  %s2, 256, %s32, [#allocation7], 128, 128, 8
    $region13: #{tpu_custom_call.1} parent=1 // pred_fallthru
      _
    // Predicated region
    $region14: #{tpu_custom_call.1} parent=1 // pred_check
      _
    $region15: #{tpu_custom_call.1} parent=1 // pred_check_branch
      %39 = sbr.rel (0) target = $region17
    $region16: #{tpu_custom_call.1} parent=1 // pred_region
      %40 = dma.done [#allocation4], 256
    $region17: #{tpu_custom_call.1} parent=1 // pred_fallthru
      _
    // Predicated region
    $region18: #{tpu_custom_call.1} parent=1 // pred_check
      _
    $region19: #{tpu_custom_call.1} parent=1 // pred_check_branch
      %42 = sbr.rel (0) target = $region21
    $region20: #{tpu_custom_call.1} parent=1 // pred_region
      %43 = dma.done [#allocation7], 256
    $region21: #{tpu_custom_call.1} parent=1 // pred_fallthru
      _
    %s44 = sld [smem:[#allocation2]]
    %v45 = vld [vmem:[#allocation6] sm:$0xff]
    %v46 = vld [vmem:[#allocation6 + $0x8] sm:$0xff]
    %v47 = vstv %s44
    %v48 = vmul.f32 %v45, %v47
    %v49 = vmul.f32 %v46, %v47
    %v50 = vxor.u32 %v48, 2147483648
    %v51 = vxor.u32 %v49, 2147483648
    %v52 = vmul.f32 %v50, 1.442695
    %v53 = vpow.pop %v52
    %v54 = vmul.f32 %v51, 1.442695
    %v55 = vpow.pop %v54
    %v56 = vadd.f32 %v53, 1.0
    %v57 = vadd.f32 %v55, 1.0
    %v58 = vrcp.pop %v56
    %v59 = vmul.f32 1.0, %v58
    %v60 = vrcp.pop %v57
    %v61 = vmul.f32 1.0, %v60
    %v62 = vld [vmem:[#allocation3] sm:$0xff]
    %v63 = vld [vmem:[#allocation3 + $0x8] sm:$0xff]
    %v64 = vmul.f32 %v62, %v59
    %v65 = vmul.f32 %v63, %v61
    %66 = vst [vmem:[#allocation8] sm:$0xff] %v64
    %67 = vst [vmem:[#allocation8 + $0x8] sm:$0xff] %v65
    // Predicated region
    $region22: #{tpu_custom_call.1} parent=1 // pred_check
      _
    $region23: #{tpu_custom_call.1} parent=1 // pred_check_branch
      %69 = sbr.rel (0) target = $region25
    $region24: #{tpu_custom_call.1} parent=1 // pred_region
      %s71 = ssub.s32 256, 256
      %72 = vsyncadd [#allocation5], %s71
      %s73 = sshll.u32 [#allocation8], 4
      %s74 = int_to_ptr.vmem [resolvable:$true] %s73
      %79 = dma.vmem_to_hbm [thread:$0]  %s74, 256, %s3, [#allocation5], 128, 128, 8
    $region25: #{tpu_custom_call.1} parent=1 // pred_fallthru
      _
    // Predicated region
    $region26: #{tpu_custom_call.1} parent=1 // pred_check
      _
    $region27: #{tpu_custom_call.1} parent=1 // pred_check_branch
      %81 = sbr.rel (0) target = $region29
    $region28: #{tpu_custom_call.1} parent=1 // pred_region
      %82 = dma.done [#allocation5], 256
    $region29: #{tpu_custom_call.1} parent=1 // pred_fallthru
      _
    %83 = vsyncpa [#allocation4], 1
    %84 = vsyncpa [#allocation7], 1
    %85 = vsyncpa [#allocation5], 1

</llo_original>
